<compile_context>
chip_gen: v7x
topology: tpu7x:2x2x1
jax: 0.10.0
libtpu: 0.0.40
codegen_flags: <defaults>
</compile_context>

<pallas_src>
import jax
import jax.numpy as jnp
from jax.experimental import pallas as pl
from jax.experimental.pallas import tpu as pltpu

D_FEATURE = 16
D_IN = 2                 # xys
D_HIDDEN = 64            # n_neurons=64
D_OUT = 5                # n_output_dims=5
MAX_TILE_N = 8192        # lane-dim rows per grid step (multiple of 128)


def _round_up(x, m):
    return (x + m - 1) // m * m


def _mlp_kernel(xy_ref, ft_ref, w0a_ref, w0b_ref, w1_ref, w2_ref, o_ref):
    # ---- Layer 0 (split-K replaces the concat) ------------------------------
    # xys term in full f32 on the VPU (K=2): keeps coordinate precision and
    # hides under the MXU work of the other matmuls.
    xy = xy_ref[...]                                   # (2, tile)  f32
    w0a = w0a_ref[...]                                 # (64, 2)    f32
    h = w0a[:, 0:1] * xy[0:1, :] + w0a[:, 1:2] * xy[1:2, :]   # (64, tile) f32
    # feature term on the MXU: bf16 operands, f32 accumulation.
    h = h + jnp.dot(w0b_ref[...], ft_ref[...].astype(jnp.bfloat16),
                    preferred_element_type=jnp.float32)
    h = jnp.maximum(h, 0.0)                            # ReLU on f32 accumulator
    # ---- Layer 1 ------------------------------------------------------------
    h = jnp.dot(w1_ref[...], h.astype(jnp.bfloat16),
                preferred_element_type=jnp.float32)
    h = jnp.maximum(h, 0.0)
    # ---- Output layer (linear), lane-dense (5, tile) store ------------------
    out = jnp.dot(w2_ref[...], h.astype(jnp.bfloat16),
                  preferred_element_type=jnp.float32)
    o_ref[...] = out.astype(o_ref.dtype)


def label_network_forward_cf(xys_cf, feats_cf, w0, w1, w2, *, max_tile=MAX_TILE_N):
    """Channels-first fast path.

    xys_cf: (2, N) f32, feats_cf: (16, N) f32, weights f32 -> (5, N) f32.
    """
    n = xys_cf.shape[1]

    # Lane-dim tile: multiple of 128, capped, and (for large N) >= ~8 grid
    # steps so v7x's two TensorCores each get several steps to pipeline.
    tile = max(128, min(max_tile, _round_up(max(pl.cdiv(n, 8), 1), 128)))
    n_pad = _round_up(n, tile)

    xys_cf = xys_cf.astype(jnp.float32)
    feats_cf = feats_cf.astype(jnp.float32)
    if n_pad != n:
        pad = n_pad - n
        xys_cf = jnp.pad(xys_cf, ((0, 0), (0, pad)))
        feats_cf = jnp.pad(feats_cf, ((0, 0), (0, pad)))

    # Transposed weights (channels-first).  xys part stays f32; rest bf16.
    w0a_t = w0[:D_IN].T.astype(jnp.float32)     # (64, 2)
    w0b_t = w0[D_IN:].T.astype(jnp.bfloat16)    # (64, 16)
    w1_t = w1.T.astype(jnp.bfloat16)            # (64, 64)
    w2_t = w2.T.astype(jnp.bfloat16)            # (5, 64)

    flops = 2 * n_pad * (D_IN * D_HIDDEN + D_FEATURE * D_HIDDEN
                         + D_HIDDEN * D_HIDDEN + D_HIDDEN * D_OUT)
    bytes_accessed = n_pad * ((D_IN + D_FEATURE) * 4 + D_OUT * 4)

    grid = (n_pad // tile,)
    out_cf = pl.pallas_call(
        _mlp_kernel,
        out_shape=jax.ShapeDtypeStruct((D_OUT, n_pad), jnp.float32),
        grid=grid,
        in_specs=[
            pl.BlockSpec((D_IN, tile), lambda i: (0, i)),           # xys tile
            pl.BlockSpec((D_FEATURE, tile), lambda i: (0, i)),      # feature tile
            pl.BlockSpec((D_HIDDEN, D_IN), lambda i: (0, 0)),       # W0[:2].T  (resident, f32)
            pl.BlockSpec((D_HIDDEN, D_FEATURE), lambda i: (0, 0)),  # W0[2:].T  (resident)
            pl.BlockSpec((D_HIDDEN, D_HIDDEN), lambda i: (0, 0)),   # W1.T      (resident)
            pl.BlockSpec((D_OUT, D_HIDDEN), lambda i: (0, 0)),      # W2.T      (resident)
        ],
        out_specs=pl.BlockSpec((D_OUT, tile), lambda i: (0, i)),    # lane-dense output
        compiler_params=pltpu.CompilerParams(
            dimension_semantics=("parallel",),
            vmem_limit_bytes=32 * 1024 * 1024,   # also overrides v5e's 16 MiB default
        ),
        cost_estimate=pl.CostEstimate(flops=flops, transcendentals=0,
                                      bytes_accessed=bytes_accessed),
    )(xys_cf, feats_cf, w0a_t, w0b_t, w1_t, w2_t)

    return out_cf[:, :n] if n_pad != n else out_cf


def label_network_forward(xys, feature_vectors, w0, w1, w2, *, max_tile=MAX_TILE_N):
    """Module-interface wrapper: xys (N,2), feature_vectors (N,16) -> (N,5) f32."""
    out_cf = label_network_forward_cf(xys.T, feature_vectors.T, w0, w1, w2,
                                      max_tile=max_tile)
    return out_cf.T


def init_params(key):
    # Deterministic synthetic weights (tcnn FullyFusedMLP layer shapes, no biases).
    k0, k1, k2 = jax.random.split(key, 3)
    d_in = D_IN + D_FEATURE
    w0 = jax.random.normal(k0, (d_in, D_HIDDEN), jnp.float32) * (1.0 / jnp.sqrt(d_in))
    w1 = jax.random.normal(k1, (D_HIDDEN, D_HIDDEN), jnp.float32) * (1.0 / jnp.sqrt(D_HIDDEN))
    w2 = jax.random.normal(k2, (D_HIDDEN, D_OUT), jnp.float32) * (1.0 / jnp.sqrt(D_HIDDEN))
    return w0, w1, w2


def _reference_like_kernel(xys, feats, w0, w1, w2):
    # Same precision recipe as the kernel: f32 xys term, bf16 weights/activations
    # elsewhere, f32 accumulation.
    h = jnp.dot(xys, w0[:D_IN], preferred_element_type=jnp.float32)
    h = h + jnp.dot(feats.astype(jnp.bfloat16), w0[D_IN:].astype(jnp.bfloat16),
                    preferred_element_type=jnp.float32)
    h = jnp.maximum(h, 0.0)
    h = jnp.dot(h.astype(jnp.bfloat16), w1.astype(jnp.bfloat16),
                preferred_element_type=jnp.float32)
    h = jnp.maximum(h, 0.0)
    return jnp.dot(h.astype(jnp.bfloat16), w2.astype(jnp.bfloat16),
                   preferred_element_type=jnp.float32)


def _reference_f32(xys, feats, w0, w1, w2):
    x = jnp.concatenate([xys, feats], axis=-1)
    h = jnp.maximum(x @ w0, 0.0)
    h = jnp.maximum(h @ w1, 0.0)
    return h @ w2


if __name__ == "__main__":
    key = jax.random.PRNGKey(0)
    kp, kx, kf = jax.random.split(key, 3)

    N = 256  # small example; wrapper pads/handles arbitrary N
    xys = jax.random.uniform(kx, (N, D_IN), jnp.float32)
    feature_vectors = jax.random.normal(kf, (N, D_FEATURE), jnp.float32)

    w0, w1, w2 = init_params(kp)

    out = label_network_forward(xys, feature_vectors, w0, w1, w2)
    out = jax.block_until_ready(out)
    assert out.shape == (N, D_OUT)

    # Matches the kernel's own precision recipe tightly.
    ref = _reference_like_kernel(xys, feature_vectors, w0, w1, w2)
    assert jnp.allclose(out, ref, atol=2e-2, rtol=2e-2), "mismatch vs recipe reference"

    # Loose sanity check against the full-f32 module semantics.
    ref32 = _reference_f32(xys, feature_vectors, w0, w1, w2)
    assert float(jnp.max(jnp.abs(out - ref32))) < 0.25, "too far from f32 reference"

    print("KERNEL_OK")
</pallas_src>

<mosaic_0001>
module attributes {stable_mosaic.version = 11 : i64} {
  func.func @_mlp_kernel(%arg0: i32, %arg1: memref<2x128xf32, #tpu.memory_space<vmem>>, %arg2: memref<16x128xf32, #tpu.memory_space<vmem>>, %arg3: memref<64x2xf32, #tpu.memory_space<vmem>>, %arg4: memref<64x16xbf16, #tpu.memory_space<vmem>>, %arg5: memref<64x64xbf16, #tpu.memory_space<vmem>>, %arg6: memref<5x64xbf16, #tpu.memory_space<vmem>>, %arg7: memref<5x128xf32, #tpu.memory_space<vmem>>) attributes {dimension_semantics = [#tpu.dimension_semantics<parallel>], iteration_bounds = array<i64: 2>, scalar_prefetch = 0 : i64, scratch_operands = 0 : i64, tpu.core_type = #tpu.core_type<tc>, window_params = [{transform_indices = @transform_0, window_bounds = array<i64: 2, 128>}, {transform_indices = @transform_1, window_bounds = array<i64: 16, 128>}, {pipeline_mode = #tpu.pipeline_mode<synchronous>, transform_indices = @transform_2, window_bounds = array<i64: 64, 2>}, {pipeline_mode = #tpu.pipeline_mode<synchronous>, transform_indices = @transform_3, window_bounds = array<i64: 64, 16>}, {pipeline_mode = #tpu.pipeline_mode<synchronous>, transform_indices = @transform_4, window_bounds = array<i64: 64, 64>}, {pipeline_mode = #tpu.pipeline_mode<synchronous>, transform_indices = @transform_5, window_bounds = array<i64: 5, 64>}, {transform_indices = @transform_6, window_bounds = array<i64: 5, 128>}]} {
    %c0 = arith.constant 0 : index
    %c0_0 = arith.constant 0 : index
    %0 = vector.load %arg1[%c0, %c0_0] : memref<2x128xf32, #tpu.memory_space<vmem>>, vector<2x128xf32>
    %c0_1 = arith.constant 0 : index
    %c0_2 = arith.constant 0 : index
    %1 = vector.load %arg3[%c0_1, %c0_2] : memref<64x2xf32, #tpu.memory_space<vmem>>, vector<64x2xf32>
    %2 = vector.extract_strided_slice %1 {offsets = [0, 0], sizes = [64, 1], strides = [1, 1]} : vector<64x2xf32> to vector<64x1xf32>
    %3 = vector.extract_strided_slice %0 {offsets = [0, 0], sizes = [1, 128], strides = [1, 1]} : vector<2x128xf32> to vector<1x128xf32>
    %4 = vector.broadcast %2 : vector<64x1xf32> to vector<64x128xf32>
    %5 = vector.broadcast %3 : vector<1x128xf32> to vector<64x128xf32>
    %6 = arith.mulf %4, %5 : vector<64x128xf32>
    %7 = vector.extract_strided_slice %1 {offsets = [0, 1], sizes = [64, 1], strides = [1, 1]} : vector<64x2xf32> to vector<64x1xf32>
    %8 = vector.extract_strided_slice %0 {offsets = [1, 0], sizes = [1, 128], strides = [1, 1]} : vector<2x128xf32> to vector<1x128xf32>
    %9 = vector.broadcast %7 : vector<64x1xf32> to vector<64x128xf32>
    %10 = vector.broadcast %8 : vector<1x128xf32> to vector<64x128xf32>
    %11 = arith.mulf %9, %10 : vector<64x128xf32>
    %12 = arith.addf %6, %11 : vector<64x128xf32>
    %c0_3 = arith.constant 0 : index
    %c0_4 = arith.constant 0 : index
    %13 = vector.load %arg4[%c0_3, %c0_4] : memref<64x16xbf16, #tpu.memory_space<vmem>>, vector<64x16xbf16>
    %c0_5 = arith.constant 0 : index
    %c0_6 = arith.constant 0 : index
    %14 = vector.load %arg2[%c0_5, %c0_6] : memref<16x128xf32, #tpu.memory_space<vmem>>, vector<16x128xf32>
    %15 = arith.truncf %14 : vector<16x128xf32> to vector<16x128xbf16>
    %cst = arith.constant dense<0.000000e+00> : vector<64x128xf32>
    %16 = tpu.matmul %13, %15, %cst {dimension_numbers = #tpu.dot_dimension_numbers<[1], [0], [0], [1], [0, 0, 1, 1], [], []>} : vector<64x16xbf16>, vector<16x128xbf16>, vector<64x128xf32> -> vector<64x128xf32>
    %17 = arith.addf %12, %16 : vector<64x128xf32>
    %cst_7 = arith.constant 0.000000e+00 : f32
    %18 = vector.broadcast %cst_7 : f32 to vector<64x128xf32>
    %19 = arith.maximumf %17, %18 : vector<64x128xf32>
    %c0_8 = arith.constant 0 : index
    %c0_9 = arith.constant 0 : index
    %20 = vector.load %arg5[%c0_8, %c0_9] : memref<64x64xbf16, #tpu.memory_space<vmem>>, vector<64x64xbf16>
    %21 = arith.truncf %19 : vector<64x128xf32> to vector<64x128xbf16>
    %cst_10 = arith.constant dense<0.000000e+00> : vector<64x128xf32>
    %22 = tpu.matmul %20, %21, %cst_10 {dimension_numbers = #tpu.dot_dimension_numbers<[1], [0], [0], [1], [0, 0, 1, 1], [], []>} : vector<64x64xbf16>, vector<64x128xbf16>, vector<64x128xf32> -> vector<64x128xf32>
    %cst_11 = arith.constant 0.000000e+00 : f32
    %23 = vector.broadcast %cst_11 : f32 to vector<64x128xf32>
    %24 = arith.maximumf %22, %23 : vector<64x128xf32>
    %c0_12 = arith.constant 0 : index
    %c0_13 = arith.constant 0 : index
    %25 = vector.load %arg6[%c0_12, %c0_13] : memref<5x64xbf16, #tpu.memory_space<vmem>>, vector<5x64xbf16>
    %26 = arith.truncf %24 : vector<64x128xf32> to vector<64x128xbf16>
    %cst_14 = arith.constant dense<0.000000e+00> : vector<5x128xf32>
    %27 = tpu.matmul %25, %26, %cst_14 {dimension_numbers = #tpu.dot_dimension_numbers<[1], [0], [0], [1], [0, 0, 1, 1], [], []>} : vector<5x64xbf16>, vector<64x128xbf16>, vector<5x128xf32> -> vector<5x128xf32>
    %c0_15 = arith.constant 0 : index
    %c0_16 = arith.constant 0 : index
    %28 = vector.load %arg7[%c0_15, %c0_16] : memref<5x128xf32, #tpu.memory_space<vmem>>, vector<5x128xf32>
    tpu.vector_store %arg7[%c0_15, %c0_16], %27 {strides = array<i32>} : memref<5x128xf32, #tpu.memory_space<vmem>>, vector<5x128xf32>,
    return
  }
  func.func @transform_0(%arg0: i32) -> (i32, i32) {
    %c0_i32 = arith.constant 0 : i32
    %c0_i32_0 = arith.constant 0 : i32
    return %c0_i32, %arg0 : i32, i32
  }
  func.func @transform_1(%arg0: i32) -> (i32, i32) {
    %c0_i32 = arith.constant 0 : i32
    %c0_i32_0 = arith.constant 0 : i32
    return %c0_i32, %arg0 : i32, i32
  }
  func.func @transform_2(%arg0: i32) -> (i32, i32) {
    %c0_i32 = arith.constant 0 : i32
    %c0_i32_0 = arith.constant 0 : i32
    %c0_i32_1 = arith.constant 0 : i32
    return %c0_i32, %c0_i32_0 : i32, i32
  }
  func.func @transform_3(%arg0: i32) -> (i32, i32) {
    %c0_i32 = arith.constant 0 : i32
    %c0_i32_0 = arith.constant 0 : i32
    %c0_i32_1 = arith.constant 0 : i32
    return %c0_i32, %c0_i32_0 : i32, i32
  }
  func.func @transform_4(%arg0: i32) -> (i32, i32) {
    %c0_i32 = arith.constant 0 : i32
    %c0_i32_0 = arith.constant 0 : i32
    %c0_i32_1 = arith.constant 0 : i32
    return %c0_i32, %c0_i32_0 : i32, i32
  }
  func.func @transform_5(%arg0: i32) -> (i32, i32) {
    %c0_i32 = arith.constant 0 : i32
    %c0_i32_0 = arith.constant 0 : i32
    %c0_i32_1 = arith.constant 0 : i32
    return %c0_i32, %c0_i32_0 : i32, i32
  }
  func.func @transform_6(%arg0: i32) -> (i32, i32) {
    %c0_i32 = arith.constant 0 : i32
    %c0_i32_0 = arith.constant 0 : i32
    return %c0_i32, %arg0 : i32, i32
  }
}

</mosaic_0001>

<llo_original>
// kernel: tpu_custom_call.1
$region0: #{tpu_custom_call.1}
  #allocation0 [shape = 'u32[]', space=smem, size = 0x4, offset = 0x4, fixed_abs, tag = 'smem constant byte address 0x4 - core index']
  #allocation1 [shape = 'u32[144,128]{1,0:T(1,128)}', space=vmem, size = 0x12000, scoped, tag = 'internal scratch']
  %s0 = inlined_call_operand.vmem [shape: f32[2,256], index: 0, kind: input, shape index: {}]
  %s1 = inlined_call_operand.vmem [shape: f32[16,256], index: 1, kind: input, shape index: {}]
  %s2 = inlined_call_operand.vmem [shape: f32[64,2], index: 2, kind: input, shape index: {}]
  %s3 = inlined_call_operand.vmem [shape: bf16[64,16], index: 3, kind: input, shape index: {}]
  %s4 = inlined_call_operand.vmem [shape: bf16[64,64], index: 4, kind: input, shape index: {}]
  %s5 = inlined_call_operand.vmem [shape: bf16[5,64], index: 5, kind: input, shape index: {}]
  %s6 = inlined_call_operand.hbm [shape: f32[5,256], index: 6, kind: output, shape index: {}]
  %s7 = sld [smem:[#allocation0]]
  $region95: #{tpu_custom_call.1} parent=0
    _
  %s9 = ssub.s32 1, %s7
  %s10 = scalar_select 0, %s9, %s7
  $region1: #{tpu_custom_call.1} parent=0
    #allocation2 [shape = 'u8[16384]{0}', space=vmem, size = 0x4000, scoped, tag = 'input window, operand 1']
    #allocation3 [shape = 'u8[8192]{0}', space=vmem, size = 0x2000, scoped, tag = 'output window, operand 0']
    #allocation4 [shape = 's32[2]{0}', space=sflag, size = 0x8, scoped, tag = 'scoped memory for tpu_custom_call.1']
    %11 = vsyncpa [#allocation4], 0
    %s12 = scalar_lea.sflag [#allocation4], 1
    %13 = vsyncpa %s12, 0
    loop: start=0, step=1, limit=4
    $region2: #{tpu_custom_call.1} parent=1 // loop_pre_header
      _
    $region3: #{tpu_custom_call.1} parent=1 // loop_header
      %s15 = sphi 0, %s19
      %p16 = scmp.ge.s32.totalorder %s15, 4
      %s25 = sphi 0, %s27
      %s28 = sphi 0, %s25
      %s29 = sphi 0, %s28
      %s45 = sphi 0, %s29
      %s51 = sphi 0, %s53
      %s54 = sphi 0, %s51
      %s55 = sphi 0, %s54
      %s71 = sphi 0, %s55
      %s75 = sphi 0, %s75
      %s77 = sphi 0, %s75
      %s78 = sphi 0, %s77
      %s92 = sphi 0, %s78
      %s96 = sphi 0, %s96
      %s98 = sphi 0, %s96
      %s99 = sphi 0, %s98
      %s113 = sphi 0, %s99
      %s117 = sphi 0, %s117
      %s119 = sphi 0, %s117
      %s120 = sphi 0, %s119
      %s134 = sphi 0, %s120
      %s138 = sphi 0, %s138
      %s140 = sphi 0, %s138
      %s141 = sphi 0, %s140
      %s155 = sphi 0, %s141
      %s161 = sphi 0, %s163
      %s164 = sphi 0, %s161
      %s165 = sphi 0, %s164
      %s181 = sphi 0, %s165
    $region4: #{tpu_custom_call.1} parent=1 // loop_header_branch
      %18 = sbr.rel (%p16) target = $region8
    $region5: #{tpu_custom_call.1} parent=1 // loop_body
      %s20 = ssub.s32 %s15, 1
      %s21 = ssub.s32 %s15, 2
      %s22 = sadd.s32 %s15, 1
      %s23 = ssub.s32 %s15, %s22
      %p24 = scmp.eq.s32.totalorder %s23, 0
      %s26 = sadd.s32 %s25, 1
      %s27 = scalar_select %p24, %s25, %s26
      %p30 = pneg %p24
      %p31 = scmp.eq.s32.totalorder %s15, 1
      %p32 = por %p30, %p31
      %p33 = scmp.ne.s32.totalorder %s25, %s28
      %p34 = scmp.eq.s32.totalorder %s15, 0
      %p35 = por %p33, %p34
      %p36 = scmp.ne.s32.totalorder %s25, %s28
      %p37 = scmp.eq.s32.totalorder %s20, 1
      %p38 = por %p36, %p37
      %p39 = scmp.ne.s32.totalorder %s28, %s29
      %p40 = scmp.eq.s32.totalorder %s20, 0
      %p41 = por %p39, %p40
      %p42 = scmp.ne.s32.totalorder %s28, %s29
      %p43 = scmp.eq.s32.totalorder %s21, 1
      %p44 = por %p42, %p43
      %p46 = scmp.ne.s32.totalorder %s29, %s45
      %p47 = scmp.eq.s32.totalorder %s21, 0
      %p48 = por %p46, %p47
      %s49 = ssub.s32 %s15, %s22
      %p50 = scmp.eq.s32.totalorder %s49, 0
      %s52 = sadd.s32 %s51, 1
      %s53 = scalar_select %p50, %s51, %s52
      %p56 = pneg %p50
      %p57 = scmp.eq.s32.totalorder %s15, 1
      %p58 = por %p56, %p57
      %p59 = scmp.ne.s32.totalorder %s51, %s54
      %p60 = scmp.eq.s32.totalorder %s15, 0
      %p61 = por %p59, %p60
      %p62 = scmp.ne.s32.totalorder %s51, %s54
      %p63 = scmp.eq.s32.totalorder %s20, 1
      %p64 = por %p62, %p63
      %p65 = scmp.ne.s32.totalorder %s54, %s55
      %p66 = scmp.eq.s32.totalorder %s20, 0
      %p67 = por %p65, %p66
      %p68 = scmp.ne.s32.totalorder %s54, %s55
      %p69 = scmp.eq.s32.totalorder %s21, 1
      %p70 = por %p68, %p69
      %p72 = scmp.ne.s32.totalorder %s55, %s71
      %p73 = scmp.eq.s32.totalorder %s21, 0
      %p74 = por %p72, %p73
      %s76 = sadd.s32 %s75, 1
      %p79 = scmp.eq.s32.totalorder %s15, 1
      %p80 = scmp.ne.s32.totalorder %s75, %s77
      %p81 = scmp.eq.s32.totalorder %s15, 0
      %p82 = por %p80, %p81
      %p83 = scmp.ne.s32.totalorder %s75, %s77
      %p84 = scmp.eq.s32.totalorder %s20, 1
      %p85 = por %p83, %p84
      %p86 = scmp.ne.s32.totalorder %s77, %s78
      %p87 = scmp.eq.s32.totalorder %s20, 0
      %p88 = por %p86, %p87
      %p89 = scmp.ne.s32.totalorder %s77, %s78
      %p90 = scmp.eq.s32.totalorder %s21, 1
      %p91 = por %p89, %p90
      %p93 = scmp.ne.s32.totalorder %s78, %s92
      %p94 = scmp.eq.s32.totalorder %s21, 0
      %p95 = por %p93, %p94
      %s97 = sadd.s32 %s96, 1
      %p100 = scmp.eq.s32.totalorder %s15, 1
      %p101 = scmp.ne.s32.totalorder %s96, %s98
      %p102 = scmp.eq.s32.totalorder %s15, 0
      %p103 = por %p101, %p102
      %p104 = scmp.ne.s32.totalorder %s96, %s98
      %p105 = scmp.eq.s32.totalorder %s20, 1
      %p106 = por %p104, %p105
      %p107 = scmp.ne.s32.totalorder %s98, %s99
      %p108 = scmp.eq.s32.totalorder %s20, 0
      %p109 = por %p107, %p108
      %p110 = scmp.ne.s32.totalorder %s98, %s99
      %p111 = scmp.eq.s32.totalorder %s21, 1
      %p112 = por %p110, %p111
      %p114 = scmp.ne.s32.totalorder %s99, %s113
      %p115 = scmp.eq.s32.totalorder %s21, 0
      %p116 = por %p114, %p115
      %s118 = sadd.s32 %s117, 1
      %p121 = scmp.eq.s32.totalorder %s15, 1
      %p122 = scmp.ne.s32.totalorder %s117, %s119
      %p123 = scmp.eq.s32.totalorder %s15, 0
      %p124 = por %p122, %p123
      %p125 = scmp.ne.s32.totalorder %s117, %s119
      %p126 = scmp.eq.s32.totalorder %s20, 1
      %p127 = por %p125, %p126
      %p128 = scmp.ne.s32.totalorder %s119, %s120
      %p129 = scmp.eq.s32.totalorder %s20, 0
      %p130 = por %p128, %p129
      %p131 = scmp.ne.s32.totalorder %s119, %s120
      %p132 = scmp.eq.s32.totalorder %s21, 1
      %p133 = por %p131, %p132
      %p135 = scmp.ne.s32.totalorder %s120, %s134
      %p136 = scmp.eq.s32.totalorder %s21, 0
      %p137 = por %p135, %p136
      %s139 = sadd.s32 %s138, 1
      %p142 = scmp.eq.s32.totalorder %s15, 1
      %p143 = scmp.ne.s32.totalorder %s138, %s140
      %p144 = scmp.eq.s32.totalorder %s15, 0
      %p145 = por %p143, %p144
      %p146 = scmp.ne.s32.totalorder %s138, %s140
      %p147 = scmp.eq.s32.totalorder %s20, 1
      %p148 = por %p146, %p147
      %p149 = scmp.ne.s32.totalorder %s140, %s141
      %p150 = scmp.eq.s32.totalorder %s20, 0
      %p151 = por %p149, %p150
      %p152 = scmp.ne.s32.totalorder %s140, %s141
      %p153 = scmp.eq.s32.totalorder %s21, 1
      %p154 = por %p152, %p153
      %p156 = scmp.ne.s32.totalorder %s141, %s155
      %p157 = scmp.eq.s32.totalorder %s21, 0
      %p158 = por %p156, %p157
      %s159 = ssub.s32 %s15, %s22
      %p160 = scmp.eq.s32.totalorder %s159, 0
      %s162 = sadd.s32 %s161, 1
      %s163 = scalar_select %p160, %s161, %s162
      %p166 = pneg %p160
      %p167 = scmp.eq.s32.totalorder %s15, 1
      %p168 = por %p166, %p167
      %p169 = scmp.ne.s32.totalorder %s161, %s164
      %p170 = scmp.eq.s32.totalorder %s15, 0
      %p171 = por %p169, %p170
      %p172 = scmp.ne.s32.totalorder %s161, %s164
      %p173 = scmp.eq.s32.totalorder %s20, 1
      %p174 = por %p172, %p173
      %p175 = scmp.ne.s32.totalorder %s164, %s165
      %p176 = scmp.eq.s32.totalorder %s20, 0
      %p177 = por %p175, %p176
      %p178 = scmp.ne.s32.totalorder %s164, %s165
      %p179 = scmp.eq.s32.totalorder %s21, 1
      %p180 = por %p178, %p179
      %p182 = scmp.ne.s32.totalorder %s165, %s181
      %p183 = scmp.eq.s32.totalorder %s21, 0
      %p184 = por %p182, %p183
      %p185 = scmp.le.s32.totalorder 1, %s15
      %p186 = scmp.lt.s32.totalorder %s15, 3
      %p187 = pnand %p185, %p186
      %p188 = pneg %p187
      // Predicated region
      $region9: #{tpu_custom_call.1} parent=5 // pred_check
        _
      $region10: #{tpu_custom_call.1} parent=5 // pred_check_branch
        %190 = sbr.rel (%p187) target = $region12
      $region11: #{tpu_custom_call.1} parent=5 // pred_region
        %s191 = ssub.s32 %s15, 1
        // Predicated region
        $region13: #{tpu_custom_call.1} parent=11 // pred_check
          %p192 = pneg %p88
        $region14: #{tpu_custom_call.1} parent=11 // pred_check_branch
          %194 = sbr.rel (%p192) target = $region16
        $region15: #{tpu_custom_call.1} parent=11 // pred_region
          _
        $region16: #{tpu_custom_call.1} parent=11 // pred_fallthru
          _
        // Predicated region
        $region17: #{tpu_custom_call.1} parent=11 // pred_check
          %p195 = pneg %p109
        $region18: #{tpu_custom_call.1} parent=11 // pred_check_branch
          %197 = sbr.rel (%p195) target = $region20
        $region19: #{tpu_custom_call.1} parent=11 // pred_region
          _
        $region20: #{tpu_custom_call.1} parent=11 // pred_fallthru
          _
        // Predicated region
        $region21: #{tpu_custom_call.1} parent=11 // pred_check
          %p198 = pneg %p130
        $region22: #{tpu_custom_call.1} parent=11 // pred_check_branch
          %200 = sbr.rel (%p198) target = $region24
        $region23: #{tpu_custom_call.1} parent=11 // pred_region
          _
        $region24: #{tpu_custom_call.1} parent=11 // pred_fallthru
          _
        // Predicated region
        $region25: #{tpu_custom_call.1} parent=11 // pred_check
          %p201 = pneg %p151
        $region26: #{tpu_custom_call.1} parent=11 // pred_check_branch
          %203 = sbr.rel (%p201) target = $region28
        $region27: #{tpu_custom_call.1} parent=11 // pred_region
          _
        $region28: #{tpu_custom_call.1} parent=11 // pred_fallthru
          _
      $region12: #{tpu_custom_call.1} parent=5 // pred_fallthru
        _
      %p204 = scmp.lt.s32.totalorder %s15, 2
      // Predicated region
      $region29: #{tpu_custom_call.1} parent=5 // pred_check
        %p205 = pneg %p204
      $region30: #{tpu_custom_call.1} parent=5 // pred_check_branch
        %207 = sbr.rel (%p205) target = $region32
      $region31: #{tpu_custom_call.1} parent=5 // pred_region
        // Predicated region
        $region33: #{tpu_custom_call.1} parent=31 // pred_check
          %p208 = pneg %p35
        $region34: #{tpu_custom_call.1} parent=31 // pred_check_branch
          %210 = sbr.rel (%p208) target = $region36
        $region35: #{tpu_custom_call.1} parent=31 // pred_region
          %p211 = scmp.lt.s32.totalorder %s15, 1
          %s212 = scalar_select %p211, %s15, 1
          %s213 = smul.addr %s212, 2
          %s214 = scalar_lea.vmem %s0, %s213
        $region36: #{tpu_custom_call.1} parent=31 // pred_fallthru
          _
        // Predicated region
        $region37: #{tpu_custom_call.1} parent=31 // pred_check
          %p215 = pneg %p61
        $region38: #{tpu_custom_call.1} parent=31 // pred_check_branch
          %217 = sbr.rel (%p215) target = $region40
        $region39: #{tpu_custom_call.1} parent=31 // pred_region
          %s218 = sand.u32 %s51, 1
          %s219 = sand.u32 %s51, 1
          %s220 = smul.addr %s219, 16
          %s221 = scalar_lea.vmem [#allocation2], %s220
          %s222 = smul.addr %s15, 8
          %s223 = scalar_lea.vmem %s1, %s222
          // Predicated region
          $region41: #{tpu_custom_call.1} parent=39 // pred_check
            _
          $region42: #{tpu_custom_call.1} parent=39 // pred_check_branch
            %225 = sbr.rel (0) target = $region44
          $region43: #{tpu_custom_call.1} parent=39 // pred_region
            // Predicated region
            $region45: #{tpu_custom_call.1} parent=43 // pred_check
              _
            $region46: #{tpu_custom_call.1} parent=43 // pred_check_branch
              %227 = sbr.rel (0) target = $region48
            $region47: #{tpu_custom_call.1} parent=43 // pred_region
              // Predicated region
              $region60: #{tpu_custom_call.1} parent=47 // pred_check
                _
              $region61: #{tpu_custom_call.1} parent=47 // pred_check_branch
                %244 = sbr.rel (0) target = $region63
              $region62: #{tpu_custom_call.1} parent=47 // pred_region
                loop: start=0, step=1, limit=1
                $region64: #{tpu_custom_call.1} parent=62 // loop_pre_header
                  _
                $region65: #{tpu_custom_call.1} parent=62 // loop_header
                  %s246 = sphi 0, %s250
                  %p247 = scmp.ge.s32.totalorder %s246, 1
                  %s251 = sphi %s223, %s223
                  %s252 = sphi %s221, %s221
                $region66: #{tpu_custom_call.1} parent=62 // loop_header_branch
                  %249 = sbr.rel (%p247) target = $region70
                $region67: #{tpu_custom_call.1} parent=62 // loop_body
                  %v253 = vld [vmem:[%s251] sm:$0xff]
                  %254 = vst [vmem:[%s252] sm:$0xff] %v253
                  %v255 = vld [vmem:[%s251 + $0x10] sm:$0xff]
                  %256 = vst [vmem:[%s252 + $0x8] sm:$0xff] %v255
                $region68: #{tpu_custom_call.1} parent=62 // loop_footer
                  %s250 = sadd.s32 1, %s246
                $region69: #{tpu_custom_call.1} parent=62 // loop_footer_branch
                  %245 = sbr.rel target = $region65
                $region70: #{tpu_custom_call.1} parent=62 // loop_exit
                  _
              $region63: #{tpu_custom_call.1} parent=47 // pred_fallthru
                _
              // Predicated region
              $region71: #{tpu_custom_call.1} parent=47 // pred_check
                _
              $region72: #{tpu_custom_call.1} parent=47 // pred_check_branch
                %258 = sbr.rel target = $region74
              $region73: #{tpu_custom_call.1} parent=47 // pred_region
                _
              $region74: #{tpu_custom_call.1} parent=47 // pred_fallthru
                _
            $region48: #{tpu_custom_call.1} parent=43 // pred_fallthru
              _
            // Predicated region
            $region49: #{tpu_custom_call.1} parent=43 // pred_check
              _
            $region50: #{tpu_custom_call.1} parent=43 // pred_check_branch
              %229 = sbr.rel target = $region52
            $region51: #{tpu_custom_call.1} parent=43 // pred_region
              loop: start=0, step=1, limit=1
              $region53: #{tpu_custom_call.1} parent=51 // loop_pre_header
                _
              $region54: #{tpu_custom_call.1} parent=51 // loop_header
                %s232 = sphi 0, %s236
                %p233 = scmp.ge.s32.totalorder %s232, 1
                %s237 = sphi %s223, %s223
                %s238 = sphi %s221, %s221
              $region55: #{tpu_custom_call.1} parent=51 // loop_header_branch
                %235 = sbr.rel (%p233) target = $region59
              $region56: #{tpu_custom_call.1} parent=51 // loop_body
                %v239 = vld [vmem:[%s237] sm:$0xff]
                %240 = vst [vmem:[%s238] sm:$0xff] %v239
                %v241 = vld [vmem:[%s237 + $0x10] sm:$0xff]
                %242 = vst [vmem:[%s238 + $0x8] sm:$0xff] %v241
              $region57: #{tpu_custom_call.1} parent=51 // loop_footer
                %s236 = sadd.s32 1, %s232
              $region58: #{tpu_custom_call.1} parent=51 // loop_footer_branch
                %231 = sbr.rel target = $region54
              $region59: #{tpu_custom_call.1} parent=51 // loop_exit
                _
            $region52: #{tpu_custom_call.1} parent=43 // pred_fallthru
              _
          $region44: #{tpu_custom_call.1} parent=39 // pred_fallthru
            _
          %259 = vnop
        $region40: #{tpu_custom_call.1} parent=31 // pred_fallthru
          _
      $region32: #{tpu_custom_call.1} parent=5 // pred_fallthru
        _
      %p260 = scmp.le.s32.totalorder 1, %s15
      %p261 = scmp.lt.s32.totalorder %s15, 3
      %p262 = pnand %p260, %p261
      %p263 = pneg %p262
      // Predicated region
      $region75: #{tpu_custom_call.1} parent=5 // pred_check
        _
      $region76: #{tpu_custom_call.1} parent=5 // pred_check_branch
        %265 = sbr.rel (%p262) target = $region78
      $region77: #{tpu_custom_call.1} parent=5 // pred_region
        %s266 = ssub.s32 %s15, 1
        %s267 = sand.u32 %s54, 1
        %s268 = sand.u32 %s54, 1
        %s269 = smul.addr %s268, 16
        %s270 = scalar_lea.vmem [#allocation2], %s269
        // Predicated region
        $region79: #{tpu_custom_call.1} parent=77 // pred_check
          %p271 = pneg %p67
        $region80: #{tpu_custom_call.1} parent=77 // pred_check_branch
          %273 = sbr.rel (%p271) target = $region82
        $region81: #{tpu_custom_call.1} parent=77 // pred_region
          _
        $region82: #{tpu_custom_call.1} parent=77 // pred_fallthru
          _
        %p274 = scmp.lt.s32.totalorder %s20, 1
        %s275 = scalar_select %p274, %s20, 1
        %s276 = smul.addr %s275, 2
        %s277 = scalar_lea.vmem %s0, %s276
        %p278 = pneg %p41
        %p279 = pneg %p38
        %s280 = sand.u32 %s54, 1
        %s281 = sand.u32 %s54, 1
        %s282 = smul.addr %s281, 16
        %s283 = scalar_lea.vmem [#allocation2], %s282
        %p284 = pneg %p67
        %p285 = pneg %p64
        %p286 = pneg %p88
        %p287 = pneg %p85
        %p288 = pneg %p109
        %p289 = pneg %p106
        %p290 = pneg %p130
        %p291 = pneg %p127
        %p292 = pneg %p151
        %p293 = pneg %p148
        %p294 = pneg %p177
        %p295 = pneg %p174
        %s296 = sand.u32 %s164, 1
        %s297 = scalar_lea.sflag [#allocation4], %s296
        %s298 = sand.u32 %s164, 1
        %s299 = smul.addr %s298, 8
        %s300 = scalar_lea.vmem [#allocation3], %s299
        %p301 = scmp.lt.s32.totalorder %s20, 1
        %s302 = scalar_select %p301, %s20, 1
        %s303 = smul.addr %s302, 2
        %s304 = scalar_lea.vmem %s0, %s303
        %v306 = vld [vmem:[%s304] sm:$0x3]
        %v307 = vld [vmem:[%s2] sm:$0xff]
        %v308 = vld [vmem:[%s2 + $0x8] sm:$0xff]
        %v309 = vld [vmem:[%s2 + $0x10] sm:$0xff]
        %v310 = vld [vmem:[%s2 + $0x18] sm:$0xff]
        %v311 = vld [vmem:[%s2 + $0x20] sm:$0xff]
        %v312 = vld [vmem:[%s2 + $0x28] sm:$0xff]
        %v313 = vld [vmem:[%s2 + $0x30] sm:$0xff]
        %v314 = vld [vmem:[%s2 + $0x38] sm:$0xff]
        %316 = vset.pattern.permute.xlu0 0
        %317 = vperm.xlu0 %316, %v307
        %v318 = vpop.permute.xlu0 %317
        %321 = vset.pattern.permute.xlu0 0
        %322 = vperm.xlu0 %321, %v308
        %v323 = vpop.permute.xlu0 %322
        %326 = vset.pattern.permute.xlu0 0
        %327 = vperm.xlu0 %326, %v309
        %v328 = vpop.permute.xlu0 %327
        %331 = vset.pattern.permute.xlu0 0
        %332 = vperm.xlu0 %331, %v310
        %v333 = vpop.permute.xlu0 %332
        %336 = vset.pattern.permute.xlu0 0
        %337 = vperm.xlu0 %336, %v311
        %v338 = vpop.permute.xlu0 %337
        %341 = vset.pattern.permute.xlu0 0
        %342 = vperm.xlu0 %341, %v312
        %v343 = vpop.permute.xlu0 %342
        %346 = vset.pattern.permute.xlu0 0
        %347 = vperm.xlu0 %346, %v313
        %v348 = vpop.permute.xlu0 %347
        %351 = vset.pattern.permute.xlu0 0
        %352 = vperm.xlu0 %351, %v314
        %v353 = vpop.permute.xlu0 %352
        %v355 = vlaneseq
        %v356 = vshrl.u32 %v355, 7
        %v357 = vsub.s32 0, %v356
        %v358 = vrot.slane %v306, %v357
        %v359 = vmul.f32 %v318, %v358
        %v360 = vmul.f32 %v323, %v358
        %v361 = vmul.f32 %v328, %v358
        %v362 = vmul.f32 %v333, %v358
        %v363 = vmul.f32 %v338, %v358
        %v364 = vmul.f32 %v343, %v358
        %v365 = vmul.f32 %v348, %v358
        %v366 = vmul.f32 %v353, %v358
        %367 = vset.pattern.permute.xlu0 1
        %368 = vperm.xlu0 %367, %v307
        %v369 = vpop.permute.xlu0 %368
        %371 = vset.pattern.permute.xlu0 1
        %372 = vperm.xlu0 %371, %v308
        %v373 = vpop.permute.xlu0 %372
        %375 = vset.pattern.permute.xlu0 1
        %376 = vperm.xlu0 %375, %v309
        %v377 = vpop.permute.xlu0 %376
        %379 = vset.pattern.permute.xlu0 1
        %380 = vperm.xlu0 %379, %v310
        %v381 = vpop.permute.xlu0 %380
        %383 = vset.pattern.permute.xlu0 1
        %384 = vperm.xlu0 %383, %v311
        %v385 = vpop.permute.xlu0 %384
        %387 = vset.pattern.permute.xlu0 1
        %388 = vperm.xlu0 %387, %v312
        %v389 = vpop.permute.xlu0 %388
        %391 = vset.pattern.permute.xlu0 1
        %392 = vperm.xlu0 %391, %v313
        %v393 = vpop.permute.xlu0 %392
        %395 = vset.pattern.permute.xlu0 1
        %396 = vperm.xlu0 %395, %v314
        %v397 = vpop.permute.xlu0 %396
        %v399 = vlaneseq
        %v400 = vshrl.u32 %v399, 7
        %v401 = vsub.s32 1, %v400
        %v402 = vrot.slane %v306, %v401
        %v403 = vmul.f32 %v369, %v402
        %v404 = vmul.f32 %v373, %v402
        %v405 = vmul.f32 %v377, %v402
        %v406 = vmul.f32 %v381, %v402
        %v407 = vmul.f32 %v385, %v402
        %v408 = vmul.f32 %v389, %v402
        %v409 = vmul.f32 %v393, %v402
        %v410 = vmul.f32 %v397, %v402
        %v411 = vadd.f32 %v359, %v403
        %v412 = vadd.f32 %v360, %v404
        %v413 = vadd.f32 %v361, %v405
        %v414 = vadd.f32 %v362, %v406
        %v415 = vadd.f32 %v363, %v407
        %v416 = vadd.f32 %v364, %v408
        %v417 = vadd.f32 %v365, %v409
        %v418 = vadd.f32 %v366, %v410
        %v419 = vld [vmem:[%s3] sm:$0xf]
        %v420 = vld [vmem:[%s3 + $0x4] sm:$0xf]
        %v421 = vld [vmem:[%s3 + $0x8] sm:$0xf]
        %v422 = vld [vmem:[%s3 + $0xc] sm:$0xf]
        %v423 = vld [vmem:[%s3 + $0x10] sm:$0xf]
        %v424 = vld [vmem:[%s3 + $0x14] sm:$0xf]
        %v425 = vld [vmem:[%s3 + $0x18] sm:$0xf]
        %v426 = vld [vmem:[%s3 + $0x1c] sm:$0xf]
        %v427 = vld [vmem:[%s270] sm:$0xff]
        %v428 = vld [vmem:[%s270 + $0x8] sm:$0xff]
        %v429 = vpack.c.bf16 %v428, %v427
        %v438 = vunpack.c.l.b16 %v419
        %v439 = vunpack.c.l.b16 %v420
        %v440 = vunpack.c.l.b16 %v421
        %v441 = vunpack.c.l.b16 %v422
        %v442 = vunpack.c.l.b16 %v423
        %v443 = vunpack.c.l.b16 %v424
        %v444 = vunpack.c.l.b16 %v425
        %v445 = vunpack.c.l.b16 %v426
        %v446 = vpack.c.b16 %v439, %v438
        %v447 = vpack.c.b16 %v441, %v440
        %v448 = vpack.c.b16 %v443, %v442
        %v449 = vpack.c.b16 %v445, %v444
        %vm450 = vcmask 130048
        %v452 = vsel %vm450, %v446, 0
        %v455 = vsel %vm450, %v447, 0
        %v458 = vsel %vm450, %v448, 0
        %v461 = vsel %vm450, %v449, 0
        %463 = vmatprep.subr.bf16.mxu0 0
        %464 = vmatpush1.bf16.msra.mxu0 %v429
        %465 = vmatprep.subr.bf16.mxu0 0
        %466 = vmatpush1.bf16.msra.mxu0 0
        %467 = vmatprep.subr.bf16.mxu0 0
        %468 = vmatpush1.bf16.msra.mxu0 0
        %469 = vmatprep.subr.bf16.mxu0 0
        %470 = vmatpush1.bf16.msra.mxu0 0
        %471 = vmatprep.subr.bf16.mxu0 0
        %472 = vmatpush1.bf16.msra.mxu0 0
        %473 = vmatprep.subr.bf16.mxu0 0
        %474 = vmatpush1.bf16.msra.mxu0 0
        %475 = vmatprep.subr.bf16.mxu0 0
        %476 = vmatpush1.bf16.msra.mxu0 0
        %477 = vmatprep.subr.bf16.mxu0 0
        %478 = vmatpush1.bf16.msra.mxu0 0
        %479 = vmatprep.subr.bf16.mxu0 0
        %480 = vmatpush1.bf16.msra.mxu0 0
        %481 = vmatprep.subr.bf16.mxu0 0
        %482 = vmatpush1.bf16.msra.mxu0 0
        %483 = vmatprep.subr.bf16.mxu0 0
        %484 = vmatpush1.bf16.msra.mxu0 0
        %485 = vmatprep.subr.bf16.mxu0 0
        %486 = vmatpush1.bf16.msra.mxu0 0
        %487 = vmatprep.subr.bf16.mxu0 0
        %488 = vmatpush1.bf16.msra.mxu0 0
        %489 = vmatprep.subr.bf16.mxu0 0
        %490 = vmatpush1.bf16.msra.mxu0 0
        %491 = vmatprep.subr.bf16.mxu0 0
        %492 = vmatpush1.bf16.msra.mxu0 0
        %493 = vmatprep.subr.bf16.mxu0 0
        %494 = vmatpush1.bf16.msra.mxu0 0
        %495 = vmatprep.mubr.bf16.mxu0 0
        %496 = vmatmul.mubr.bf16.gmra.mrb[0].mxu0 %v452
        %v497 = vpop.f32.mrb[0].mxu0
        %v498 = vadd.f32 0.0, %v497
        %v499 = vpop.f32.mrb[0].mxu0
        %v500 = vpop.f32.mrb[0].mxu0
        %v501 = vadd.f32 0.0, %v500
        %v502 = vpop.f32.mrb[0].mxu0
        %503 = vmatprep.mubr.bf16.mxu0 0
        %504 = vmatmul.mubr.bf16.gmra.mrb[0].mxu0 %v455
        %v505 = vpop.f32.mrb[0].mxu0
        %v506 = vadd.f32 0.0, %v505
        %v507 = vpop.f32.mrb[0].mxu0
        %v508 = vpop.f32.mrb[0].mxu0
        %v509 = vadd.f32 0.0, %v508
        %v510 = vpop.f32.mrb[0].mxu0
        %511 = vmatprep.mubr.bf16.mxu0 0
        %512 = vmatmul.mubr.bf16.gmra.mrb[0].mxu0 %v458
        %v513 = vpop.f32.mrb[0].mxu0
        %v514 = vadd.f32 0.0, %v513
        %v515 = vpop.f32.mrb[0].mxu0
        %v516 = vpop.f32.mrb[0].mxu0
        %v517 = vadd.f32 0.0, %v516
        %v518 = vpop.f32.mrb[0].mxu0
        %519 = vmatprep.mubr.bf16.mxu0 0
        %520 = vmatmul.mubr.bf16.gmra.mrb[0].mxu0 %v461
        %v521 = vpop.f32.mrb[0].mxu0
        %v522 = vadd.f32 0.0, %v521
        %v523 = vpop.f32.mrb[0].mxu0
        %v524 = vpop.f32.mrb[0].mxu0
        %v525 = vadd.f32 0.0, %v524
        %v526 = vpop.f32.mrb[0].mxu0
        %527 = vdwg.mxu0
        %v528 = vadd.f32 %v411, %v498
        %v529 = vadd.f32 %v412, %v501
        %v530 = vadd.f32 %v413, %v506
        %v531 = vadd.f32 %v414, %v509
        %v532 = vadd.f32 %v415, %v514
        %v533 = vadd.f32 %v416, %v517
        %v534 = vadd.f32 %v417, %v522
        %v535 = vadd.f32 %v418, %v525
        %v536 = vmax.f32 %v528, 0.0
        %v537 = vmax.f32 %v529, 0.0
        %v538 = vmax.f32 %v530, 0.0
        %v539 = vmax.f32 %v531, 0.0
        %v540 = vmax.f32 %v532, 0.0
        %v541 = vmax.f32 %v533, 0.0
        %v542 = vmax.f32 %v534, 0.0
        %v543 = vmax.f32 %v535, 0.0
        %v544 = vld [vmem:[%s4] sm:$0xf]
        %v545 = vld [vmem:[%s4 + $0x4] sm:$0xf]
        %v546 = vld [vmem:[%s4 + $0x8] sm:$0xf]
        %v547 = vld [vmem:[%s4 + $0xc] sm:$0xf]
        %v548 = vld [vmem:[%s4 + $0x10] sm:$0xf]
        %v549 = vld [vmem:[%s4 + $0x14] sm:$0xf]
        %v550 = vld [vmem:[%s4 + $0x18] sm:$0xf]
        %v551 = vld [vmem:[%s4 + $0x1c] sm:$0xf]
        %v552 = vpack.c.bf16 %v537, %v536
        %v553 = vpack.c.bf16 %v539, %v538
        %v554 = vpack.c.bf16 %v541, %v540
        %v555 = vpack.c.bf16 %v543, %v542
        %v564 = vunpack.c.l.b16 %v544
        %v565 = vunpack.c.l.b16 %v545
        %v566 = vunpack.c.l.b16 %v546
        %v567 = vunpack.c.l.b16 %v547
        %v568 = vunpack.c.l.b16 %v548
        %v569 = vunpack.c.l.b16 %v549
        %v570 = vunpack.c.l.b16 %v550
        %v571 = vunpack.c.l.b16 %v551
        %v572 = vpack.c.b16 %v565, %v564
        %v573 = vpack.c.b16 %v567, %v566
        %v574 = vpack.c.b16 %v569, %v568
        %v575 = vpack.c.b16 %v571, %v570
        %vm576 = vcmask 523264
        %v578 = vsel %vm576, %v572, 0
        %v581 = vsel %vm576, %v573, 0
        %v584 = vsel %vm576, %v574, 0
        %v587 = vsel %vm576, %v575, 0
        %589 = vmatprep.subr.bf16.mxu0 0
        %590 = vmatpush1.bf16.msra.mxu0 %v552
        %591 = vmatprep.subr.bf16.mxu0 0
        %592 = vmatpush1.bf16.msra.mxu0 %v553
        %593 = vmatprep.subr.bf16.mxu0 0
        %594 = vmatpush1.bf16.msra.mxu0 %v554
        %595 = vmatprep.subr.bf16.mxu0 0
        %596 = vmatpush1.bf16.msra.mxu0 %v555
        %597 = vmatprep.subr.bf16.mxu0 0
        %598 = vmatpush1.bf16.msra.mxu0 0
        %599 = vmatprep.subr.bf16.mxu0 0
        %600 = vmatpush1.bf16.msra.mxu0 0
        %601 = vmatprep.subr.bf16.mxu0 0
        %602 = vmatpush1.bf16.msra.mxu0 0
        %603 = vmatprep.subr.bf16.mxu0 0
        %604 = vmatpush1.bf16.msra.mxu0 0
        %605 = vmatprep.subr.bf16.mxu0 0
        %606 = vmatpush1.bf16.msra.mxu0 0
        %607 = vmatprep.subr.bf16.mxu0 0
        %608 = vmatpush1.bf16.msra.mxu0 0
        %609 = vmatprep.subr.bf16.mxu0 0
        %610 = vmatpush1.bf16.msra.mxu0 0
        %611 = vmatprep.subr.bf16.mxu0 0
        %612 = vmatpush1.bf16.msra.mxu0 0
        %613 = vmatprep.subr.bf16.mxu0 0
        %614 = vmatpush1.bf16.msra.mxu0 0
        %615 = vmatprep.subr.bf16.mxu0 0
        %616 = vmatpush1.bf16.msra.mxu0 0
        %617 = vmatprep.subr.bf16.mxu0 0
        %618 = vmatpush1.bf16.msra.mxu0 0
        %619 = vmatprep.subr.bf16.mxu0 0
        %620 = vmatpush1.bf16.msra.mxu0 0
        %621 = vmatprep.mubr.bf16.mxu0 0
        %622 = vmatmul.mubr.bf16.gmra.mrb[0].mxu0 %v578
        %v623 = vpop.f32.mrb[0].mxu0
        %v624 = vadd.f32 0.0, %v623
        %v625 = vpop.f32.mrb[0].mxu0
        %v626 = vpop.f32.mrb[0].mxu0
        %v627 = vadd.f32 0.0, %v626
        %v628 = vpop.f32.mrb[0].mxu0
        %629 = vmatprep.mubr.bf16.mxu0 0
        %630 = vmatmul.mubr.bf16.gmra.mrb[0].mxu0 %v581
        %v631 = vpop.f32.mrb[0].mxu0
        %v632 = vadd.f32 0.0, %v631
        %v633 = vpop.f32.mrb[0].mxu0
        %v634 = vpop.f32.mrb[0].mxu0
        %v635 = vadd.f32 0.0, %v634
        %v636 = vpop.f32.mrb[0].mxu0
        %637 = vmatprep.mubr.bf16.mxu0 0
        %638 = vmatmul.mubr.bf16.gmra.mrb[0].mxu0 %v584
        %v639 = vpop.f32.mrb[0].mxu0
        %v640 = vadd.f32 0.0, %v639
        %v641 = vpop.f32.mrb[0].mxu0
        %v642 = vpop.f32.mrb[0].mxu0
        %v643 = vadd.f32 0.0, %v642
        %v644 = vpop.f32.mrb[0].mxu0
        %645 = vmatprep.mubr.bf16.mxu0 0
        %646 = vmatmul.mubr.bf16.gmra.mrb[0].mxu0 %v587
        %v647 = vpop.f32.mrb[0].mxu0
        %v648 = vadd.f32 0.0, %v647
        %v649 = vpop.f32.mrb[0].mxu0
        %v650 = vpop.f32.mrb[0].mxu0
        %v651 = vadd.f32 0.0, %v650
        %v652 = vpop.f32.mrb[0].mxu0
        %653 = vdwg.mxu0
        %v654 = vmax.f32 %v624, 0.0
        %v655 = vmax.f32 %v627, 0.0
        %v656 = vmax.f32 %v632, 0.0
        %v657 = vmax.f32 %v635, 0.0
        %v658 = vmax.f32 %v640, 0.0
        %v659 = vmax.f32 %v643, 0.0
        %v660 = vmax.f32 %v648, 0.0
        %v661 = vmax.f32 %v651, 0.0
        %v662 = vld [vmem:[%s5] sm:$0x7]
        %v663 = vpack.c.bf16 %v655, %v654
        %v664 = vpack.c.bf16 %v657, %v656
        %v665 = vpack.c.bf16 %v659, %v658
        %v666 = vpack.c.bf16 %v661, %v660
        %v668 = vsel %vm576, %v662, 0
        %670 = vmatprep.subr.bf16.mxu0 0
        %671 = vmatpush1.bf16.msra.mxu0 %v663
        %672 = vmatprep.subr.bf16.mxu0 0
        %673 = vmatpush1.bf16.msra.mxu0 %v664
        %674 = vmatprep.subr.bf16.mxu0 0
        %675 = vmatpush1.bf16.msra.mxu0 %v665
        %676 = vmatprep.subr.bf16.mxu0 0
        %677 = vmatpush1.bf16.msra.mxu0 %v666
        %678 = vmatprep.subr.bf16.mxu0 0
        %679 = vmatpush1.bf16.msra.mxu0 0
        %680 = vmatprep.subr.bf16.mxu0 0
        %681 = vmatpush1.bf16.msra.mxu0 0
        %682 = vmatprep.subr.bf16.mxu0 0
        %683 = vmatpush1.bf16.msra.mxu0 0
        %684 = vmatprep.subr.bf16.mxu0 0
        %685 = vmatpush1.bf16.msra.mxu0 0
        %686 = vmatprep.subr.bf16.mxu0 0
        %687 = vmatpush1.bf16.msra.mxu0 0
        %688 = vmatprep.subr.bf16.mxu0 0
        %689 = vmatpush1.bf16.msra.mxu0 0
        %690 = vmatprep.subr.bf16.mxu0 0
        %691 = vmatpush1.bf16.msra.mxu0 0
        %692 = vmatprep.subr.bf16.mxu0 0
        %693 = vmatpush1.bf16.msra.mxu0 0
        %694 = vmatprep.subr.bf16.mxu0 0
        %695 = vmatpush1.bf16.msra.mxu0 0
        %696 = vmatprep.subr.bf16.mxu0 0
        %697 = vmatpush1.bf16.msra.mxu0 0
        %698 = vmatprep.subr.bf16.mxu0 0
        %699 = vmatpush1.bf16.msra.mxu0 0
        %700 = vmatprep.subr.bf16.mxu0 0
        %701 = vmatpush1.bf16.msra.mxu0 0
        %702 = vmatprep.mubr.bf16.mxu0 0
        %703 = vmatmul.mubr.bf16.gmra.mrb[0].mxu0 %v668
        %v704 = vpop.f32.mrb[0].mxu0
        %v705 = vadd.f32 0.0, %v704
        %v706 = vpop.f32.mrb[0].mxu0
        %v707 = vpop.f32.mrb[0].mxu0
        %v708 = vpop.f32.mrb[0].mxu0
        %709 = vdwg.mxu0
        %710 = vst [vmem:[%s300] sm:$0x1f] %v705
        %s711 = sand.u32 %s164, 1
        %s712 = scalar_lea.sflag [#allocation4], %s711
        %s713 = sand.u32 %s164, 1
        %s714 = smul.addr %s713, 8
        %s715 = scalar_lea.vmem [#allocation3], %s714
        // Predicated region
        $region83: #{tpu_custom_call.1} parent=77 // pred_check
          %p716 = pneg %p174
        $region84: #{tpu_custom_call.1} parent=77 // pred_check_branch
          %718 = sbr.rel (%p716) target = $region86
        $region85: #{tpu_custom_call.1} parent=77 // pred_region
          %s720 = ssub.s32 128, 128
          %721 = vsyncadd %s712, %s720
          %s722 = smul.addr %s20, 128
          %s723 = scalar_lea.hbm %s6, %s722
          %s725 = sshll.u32 %s715, 4
          %s726 = int_to_ptr.vmem [resolvable:$true] %s725
          %728 = dma.vmem_to_hbm [thread:$0]  %s726, 128, %s723, %s712
        $region86: #{tpu_custom_call.1} parent=77 // pred_fallthru
          _
      $region78: #{tpu_custom_call.1} parent=5 // pred_fallthru
        _
      %p729 = scmp.le.s32.totalorder 2, %s15
      // Predicated region
      $region87: #{tpu_custom_call.1} parent=5 // pred_check
        %p730 = pneg %p729
      $region88: #{tpu_custom_call.1} parent=5 // pred_check_branch
        %732 = sbr.rel (%p730) target = $region90
      $region89: #{tpu_custom_call.1} parent=5 // pred_region
        %s733 = ssub.s32 %s15, 2
        // Predicated region
        $region91: #{tpu_custom_call.1} parent=89 // pred_check
          %p734 = pneg %p180
        $region92: #{tpu_custom_call.1} parent=89 // pred_check_branch
          %736 = sbr.rel (%p734) target = $region94
        $region93: #{tpu_custom_call.1} parent=89 // pred_region
          %s737 = sand.u32 %s165, 1
          %s738 = scalar_lea.sflag [#allocation4], %s737
          %s739 = sand.u32 %s165, 1
          %s740 = smul.addr %s739, 8
          %s741 = scalar_lea.vmem [#allocation3], %s740
          %742 = dma.done %s738, 128
        $region94: #{tpu_custom_call.1} parent=89 // pred_fallthru
          _
      $region90: #{tpu_custom_call.1} parent=5 // pred_fallthru
        _
    $region6: #{tpu_custom_call.1} parent=1 // loop_footer
      %s19 = sadd.s32 1, %s15
    $region7: #{tpu_custom_call.1} parent=1 // loop_footer_branch
      %14 = sbr.rel target = $region3
    $region8: #{tpu_custom_call.1} parent=1 // loop_exit
      _
    %743 = vsyncpa [#allocation4], 1
    %s744 = scalar_lea.sflag [#allocation4], 1
    %745 = vsyncpa %s744, 1

</llo_original>
